<compile_context>
chip_gen: v6e
topology: v6e:2x2x1
jax: 0.10.0
libtpu: 0.0.40
codegen_flags: <defaults>
</compile_context>

<pallas_src>
import jax
import jax.numpy as jnp
from jax.experimental import pallas as pl
from jax.experimental.pallas import tpu as pltpu


# ----------------------------------------------------------------------------
# Fused kernel: fc1 + Leaky LIF1 + fc2 + Leaky LIF2 for one batch block
# ----------------------------------------------------------------------------
def _snn_step_kernel(scal_ref, x_ref, w1_ref, b1_ref, w2_ref, b2_ref,
                     mem1_ref, mem2_ref,
                     spk2_ref, mem1_out_ref, mem2_out_ref):
    # scalars (SMEM): [beta1, threshold1, beta2, threshold2]
    beta1 = jnp.clip(scal_ref[0], 0.0, 1.0)   # snntorch clamps beta to [0,1]
    thr1 = scal_ref[1]
    beta2 = jnp.clip(scal_ref[2], 0.0, 1.0)
    thr2 = scal_ref[3]

    # ---- fc1 + lif1 ---------------------------------------------------------
    cur1 = jnp.dot(x_ref[...], w1_ref[...],
                   preferred_element_type=jnp.float32) + b1_ref[...]
    mem1 = mem1_ref[...]
    reset1 = (mem1 > thr1).astype(jnp.float32)          # from PREVIOUS membrane
    mem1_new = beta1 * mem1 + cur1 - reset1 * thr1      # reset-by-subtraction
    spk1 = (mem1_new > thr1).astype(jnp.float32)        # heaviside spike

    # ---- fc2 + lif2 ---------------------------------------------------------
    cur2 = jnp.dot(spk1, w2_ref[...],
                   preferred_element_type=jnp.float32) + b2_ref[...]
    mem2 = mem2_ref[...]
    reset2 = (mem2 > thr2).astype(jnp.float32)
    mem2_new = beta2 * mem2 + cur2 - reset2 * thr2
    spk2 = (mem2_new > thr2).astype(jnp.float32)

    spk2_ref[...] = spk2
    mem1_out_ref[...] = mem1_new
    mem2_out_ref[...] = mem2_new


@jax.jit
def snn_mfcc_forward(x, mem1, mem2, prep):
    """One SNN_mfcc.forward step.

    x: (B, 13) f32, mem1: (B, 128) f32, mem2: (B, 9) f32.
    Returns (spk2, mem1_new, mem2_new); the torch module returns (spk2, mem2)
    and keeps mem1 as internal state — here the new state is returned too.
    """
    B, F = x.shape
    H = prep["w1t"].shape[1]
    O = prep["w2t"].shape[1]

    # Batch block: >=2 blocks when possible so v7x can shard the "parallel"
    # axis across both TensorCores; one block otherwise.
    block_b = 32 if (B % 32 == 0 and B >= 64) else B
    grid = (B // block_b,)

    spk2, mem1_new, mem2_new = pl.pallas_call(
        _snn_step_kernel,
        out_shape=(
            jax.ShapeDtypeStruct((B, O), jnp.float32),   # spk2
            jax.ShapeDtypeStruct((B, H), jnp.float32),   # mem1_new
            jax.ShapeDtypeStruct((B, O), jnp.float32),   # mem2_new
        ),
        grid=grid,
        in_specs=[
            # learnable scalars [beta1, thr1, beta2, thr2] -> SMEM
            pl.BlockSpec((4,), lambda i: (0,),
                         memory_space=pltpu.MemorySpace.SMEM),
            pl.BlockSpec((block_b, F), lambda i: (i, 0)),   # x
            pl.BlockSpec((F, H), lambda i: (0, 0)),         # w1^T (13,128)
            pl.BlockSpec((1, H), lambda i: (0, 0)),         # b1
            pl.BlockSpec((H, O), lambda i: (0, 0)),         # w2^T (128,9)
            pl.BlockSpec((1, O), lambda i: (0, 0)),         # b2
            pl.BlockSpec((block_b, H), lambda i: (i, 0)),   # mem1
            pl.BlockSpec((block_b, O), lambda i: (i, 0)),   # mem2
        ],
        out_specs=(
            pl.BlockSpec((block_b, O), lambda i: (i, 0)),
            pl.BlockSpec((block_b, H), lambda i: (i, 0)),
            pl.BlockSpec((block_b, O), lambda i: (i, 0)),
        ),
        compiler_params=pltpu.CompilerParams(
            dimension_semantics=("parallel",)),
    )(prep["scalars"], x, prep["w1t"], prep["b1"], prep["w2t"], prep["b2"],
      mem1, mem2)
    return spk2, mem1_new, mem2_new


# ----------------------------------------------------------------------------
# Parameter handling
# ----------------------------------------------------------------------------
def prepare_params(p):
    """One-time prep: transpose torch (out,in) weights, reshape biases, and
    pack the learnable LIF scalars for the SMEM path."""
    return {
        "w1t": jnp.asarray(p["w1"], jnp.float32).T,            # (13, 128)
        "b1": jnp.asarray(p["b1"], jnp.float32).reshape(1, -1),
        "w2t": jnp.asarray(p["w2"], jnp.float32).T,            # (128, 9)
        "b2": jnp.asarray(p["b2"], jnp.float32).reshape(1, -1),
        "scalars": jnp.stack([p["beta1"], p["thr1"],
                              p["beta2"], p["thr2"]]).astype(jnp.float32),
    }


def _quantize(a, scale=8.0):
    # Test-data trick: values on a 1/8 grid are exact in bf16, so the MXU and
    # the XLA reference matmuls are bit-exact and the spike comparison is
    # deterministic.
    return jnp.round(a * scale) / scale


def make_params(key):
    ks = jax.random.split(key, 4)
    s = 0.25
    return {
        "w1": _quantize(jax.random.normal(ks[0], (128, 13), jnp.float32) * s),  # torch (out,in)
        "b1": _quantize(jax.random.normal(ks[1], (128,), jnp.float32) * s),
        "w2": _quantize(jax.random.normal(ks[2], (9, 128), jnp.float32) * s),
        "b2": _quantize(jax.random.normal(ks[3], (9,), jnp.float32) * s),
        "beta1": jnp.float32(0.9), "thr1": jnp.float32(1.0),
        "beta2": jnp.float32(0.9), "thr2": jnp.float32(1.0),
    }


# ----------------------------------------------------------------------------
# Pure-JAX reference (snntorch Leaky forward semantics)
# ----------------------------------------------------------------------------
def snn_mfcc_reference(x, mem1, mem2, p):
    def leaky(cur, mem, beta, thr):
        reset = (mem > thr).astype(jnp.float32)
        mem_new = jnp.clip(beta, 0.0, 1.0) * mem + cur - reset * thr
        spk = (mem_new > thr).astype(jnp.float32)
        return spk, mem_new

    cur1 = x @ p["w1"].T + p["b1"]
    spk1, mem1_new = leaky(cur1, mem1, p["beta1"], p["thr1"])
    cur2 = spk1 @ p["w2"].T + p["b2"]
    spk2, mem2_new = leaky(cur2, mem2, p["beta2"], p["thr2"])
    return spk2, mem1_new, mem2_new


if __name__ == "__main__":
    root = jax.random.PRNGKey(0)
    kp, kx = jax.random.split(root)
    params = make_params(kp)
    prep = prepare_params(params)

    B, F, H, O = 64, 13, 128, 9          # B=64 hard-coded in the module
    # lif.init_leaky() -> zeros broadcast to the layer shape on first use
    mem1 = jnp.zeros((B, H), jnp.float32)
    mem2 = jnp.zeros((B, O), jnp.float32)
    ref_mem1, ref_mem2 = mem1, mem2

    # A few of the module's 345 time steps, enough to exercise the membrane
    # carry and the reset-by-subtraction path.
    T = 4
    xs = _quantize(jax.random.normal(kx, (T, B, F), jnp.float32))

    spk2 = ref_spk2 = None
    for t in range(T):
        spk2, mem1, mem2 = snn_mfcc_forward(xs[t], mem1, mem2, prep)
        ref_spk2, ref_mem1, ref_mem2 = snn_mfcc_reference(
            xs[t], ref_mem1, ref_mem2, params)

    spk2, mem1, mem2 = jax.block_until_ready((spk2, mem1, mem2))

    assert spk2.shape == (B, O) and mem2.shape == (B, O) and mem1.shape == (B, H)
    assert jnp.allclose(mem1, ref_mem1, rtol=1e-4, atol=1e-4), (
        float(jnp.max(jnp.abs(mem1 - ref_mem1))))
    assert jnp.allclose(mem2, ref_mem2, rtol=1e-4, atol=1e-4), (
        float(jnp.max(jnp.abs(mem2 - ref_mem2))))
    assert jnp.array_equal(spk2, ref_spk2)
    assert bool(jnp.all((spk2 == 0.0) | (spk2 == 1.0)))   # spikes are binary
    # TODO(synk): surrogate-gradient backward of snn.Leaky is not implemented
    # (forward-pass semantics only, as specified by the module's forward()).
    print("KERNEL_OK")
</pallas_src>

<mosaic_0001>
module attributes {stable_mosaic.version = 11 : i64} {
  func.func @_snn_step_kernel(%arg0: i32, %arg1: memref<4xf32, #tpu.memory_space<smem>>, %arg2: memref<32x13xf32, #tpu.memory_space<vmem>>, %arg3: memref<13x128xf32, #tpu.memory_space<vmem>>, %arg4: memref<1x128xf32, #tpu.memory_space<vmem>>, %arg5: memref<128x9xf32, #tpu.memory_space<vmem>>, %arg6: memref<1x9xf32, #tpu.memory_space<vmem>>, %arg7: memref<32x128xf32, #tpu.memory_space<vmem>>, %arg8: memref<32x9xf32, #tpu.memory_space<vmem>>, %arg9: memref<32x9xf32, #tpu.memory_space<vmem>>, %arg10: memref<32x128xf32, #tpu.memory_space<vmem>>, %arg11: memref<32x9xf32, #tpu.memory_space<vmem>>) attributes {dimension_semantics = [#tpu.dimension_semantics<parallel>], iteration_bounds = array<i64: 2>, scalar_prefetch = 0 : i64, scratch_operands = 0 : i64, tpu.core_type = #tpu.core_type<tc>, window_params = [{transform_indices = @transform_0, window_bounds = array<i64: 4>}, {transform_indices = @transform_1, window_bounds = array<i64: 32, 13>}, {pipeline_mode = #tpu.pipeline_mode<synchronous>, transform_indices = @transform_2, window_bounds = array<i64: 13, 128>}, {pipeline_mode = #tpu.pipeline_mode<synchronous>, transform_indices = @transform_3, window_bounds = array<i64: 1, 128>}, {pipeline_mode = #tpu.pipeline_mode<synchronous>, transform_indices = @transform_4, window_bounds = array<i64: 128, 9>}, {pipeline_mode = #tpu.pipeline_mode<synchronous>, transform_indices = @transform_5, window_bounds = array<i64: 1, 9>}, {transform_indices = @transform_6, window_bounds = array<i64: 32, 128>}, {transform_indices = @transform_7, window_bounds = array<i64: 32, 9>}, {transform_indices = @transform_8, window_bounds = array<i64: 32, 9>}, {transform_indices = @transform_9, window_bounds = array<i64: 32, 128>}, {transform_indices = @transform_10, window_bounds = array<i64: 32, 9>}]} {
    %c0 = arith.constant 0 : index
    %0 = memref.load %arg1[%c0] : memref<4xf32, #tpu.memory_space<smem>>
    %cst = arith.constant 0.000000e+00 : f32
    %cst_0 = arith.constant 1.000000e+00 : f32
    %1 = arith.maximumf %cst, %0 : f32
    %2 = arith.minimumf %cst_0, %1 : f32
    %c1 = arith.constant 1 : index
    %3 = memref.load %arg1[%c1] : memref<4xf32, #tpu.memory_space<smem>>
    %c2 = arith.constant 2 : index
    %4 = memref.load %arg1[%c2] : memref<4xf32, #tpu.memory_space<smem>>
    %cst_1 = arith.constant 0.000000e+00 : f32
    %cst_2 = arith.constant 1.000000e+00 : f32
    %5 = arith.maximumf %cst_1, %4 : f32
    %6 = arith.minimumf %cst_2, %5 : f32
    %c3 = arith.constant 3 : index
    %7 = memref.load %arg1[%c3] : memref<4xf32, #tpu.memory_space<smem>>
    %c0_3 = arith.constant 0 : index
    %c0_4 = arith.constant 0 : index
    %8 = vector.load %arg2[%c0_3, %c0_4] : memref<32x13xf32, #tpu.memory_space<vmem>>, vector<32x13xf32>
    %c0_5 = arith.constant 0 : index
    %c0_6 = arith.constant 0 : index
    %9 = vector.load %arg3[%c0_5, %c0_6] : memref<13x128xf32, #tpu.memory_space<vmem>>, vector<13x128xf32>
    %cst_7 = arith.constant dense<0.000000e+00> : vector<32x128xf32>
    %10 = tpu.matmul %8, %9, %cst_7 {dimension_numbers = #tpu.dot_dimension_numbers<[1], [0], [0], [1], [0, 0, 1, 1], [], []>} : vector<32x13xf32>, vector<13x128xf32>, vector<32x128xf32> -> vector<32x128xf32>
    %c0_8 = arith.constant 0 : index
    %c0_9 = arith.constant 0 : index
    %11 = vector.load %arg4[%c0_8, %c0_9] : memref<1x128xf32, #tpu.memory_space<vmem>>, vector<1x128xf32>
    %12 = vector.broadcast %11 : vector<1x128xf32> to vector<32x128xf32>
    %13 = arith.addf %10, %12 : vector<32x128xf32>
    %c0_10 = arith.constant 0 : index
    %c0_11 = arith.constant 0 : index
    %14 = vector.load %arg7[%c0_10, %c0_11] : memref<32x128xf32, #tpu.memory_space<vmem>>, vector<32x128xf32>
    %15 = vector.broadcast %3 : f32 to vector<32x128xf32>
    %16 = arith.cmpf ogt, %14, %15 : vector<32x128xf32>
    %17 = arith.extui %16 : vector<32x128xi1> to vector<32x128xi32>
    %18 = arith.sitofp %17 : vector<32x128xi32> to vector<32x128xf32>
    %19 = vector.broadcast %2 : f32 to vector<32x128xf32>
    %20 = arith.mulf %19, %14 : vector<32x128xf32>
    %21 = arith.addf %20, %13 : vector<32x128xf32>
    %22 = vector.broadcast %3 : f32 to vector<32x128xf32>
    %23 = arith.mulf %18, %22 : vector<32x128xf32>
    %24 = arith.subf %21, %23 : vector<32x128xf32>
    %25 = vector.broadcast %3 : f32 to vector<32x128xf32>
    %26 = arith.cmpf ogt, %24, %25 : vector<32x128xf32>
    %27 = arith.extui %26 : vector<32x128xi1> to vector<32x128xi32>
    %28 = arith.sitofp %27 : vector<32x128xi32> to vector<32x128xf32>
    %c0_12 = arith.constant 0 : index
    %c0_13 = arith.constant 0 : index
    %29 = vector.load %arg5[%c0_12, %c0_13] : memref<128x9xf32, #tpu.memory_space<vmem>>, vector<128x9xf32>
    %cst_14 = arith.constant dense<0.000000e+00> : vector<32x9xf32>
    %30 = tpu.matmul %28, %29, %cst_14 {dimension_numbers = #tpu.dot_dimension_numbers<[1], [0], [0], [1], [0, 0, 1, 1], [], []>} : vector<32x128xf32>, vector<128x9xf32>, vector<32x9xf32> -> vector<32x9xf32>
    %c0_15 = arith.constant 0 : index
    %c0_16 = arith.constant 0 : index
    %31 = vector.load %arg6[%c0_15, %c0_16] : memref<1x9xf32, #tpu.memory_space<vmem>>, vector<1x9xf32>
    %32 = vector.broadcast %31 : vector<1x9xf32> to vector<32x9xf32>
    %33 = arith.addf %30, %32 : vector<32x9xf32>
    %c0_17 = arith.constant 0 : index
    %c0_18 = arith.constant 0 : index
    %34 = vector.load %arg8[%c0_17, %c0_18] : memref<32x9xf32, #tpu.memory_space<vmem>>, vector<32x9xf32>
    %35 = vector.broadcast %7 : f32 to vector<32x9xf32>
    %36 = arith.cmpf ogt, %34, %35 : vector<32x9xf32>
    %37 = arith.extui %36 : vector<32x9xi1> to vector<32x9xi32>
    %38 = arith.sitofp %37 : vector<32x9xi32> to vector<32x9xf32>
    %39 = vector.broadcast %6 : f32 to vector<32x9xf32>
    %40 = arith.mulf %39, %34 : vector<32x9xf32>
    %41 = arith.addf %40, %33 : vector<32x9xf32>
    %42 = vector.broadcast %7 : f32 to vector<32x9xf32>
    %43 = arith.mulf %38, %42 : vector<32x9xf32>
    %44 = arith.subf %41, %43 : vector<32x9xf32>
    %45 = vector.broadcast %7 : f32 to vector<32x9xf32>
    %46 = arith.cmpf ogt, %44, %45 : vector<32x9xf32>
    %47 = arith.extui %46 : vector<32x9xi1> to vector<32x9xi32>
    %48 = arith.sitofp %47 : vector<32x9xi32> to vector<32x9xf32>
    %c0_19 = arith.constant 0 : index
    %c0_20 = arith.constant 0 : index
    %49 = vector.load %arg9[%c0_19, %c0_20] : memref<32x9xf32, #tpu.memory_space<vmem>>, vector<32x9xf32>
    tpu.vector_store %arg9[%c0_19, %c0_20], %48 {strides = array<i32>} : memref<32x9xf32, #tpu.memory_space<vmem>>, vector<32x9xf32>,
    %c0_21 = arith.constant 0 : index
    %c0_22 = arith.constant 0 : index
    %50 = vector.load %arg10[%c0_21, %c0_22] : memref<32x128xf32, #tpu.memory_space<vmem>>, vector<32x128xf32>
    tpu.vector_store %arg10[%c0_21, %c0_22], %24 {strides = array<i32>} : memref<32x128xf32, #tpu.memory_space<vmem>>, vector<32x128xf32>,
    %c0_23 = arith.constant 0 : index
    %c0_24 = arith.constant 0 : index
    %51 = vector.load %arg11[%c0_23, %c0_24] : memref<32x9xf32, #tpu.memory_space<vmem>>, vector<32x9xf32>
    tpu.vector_store %arg11[%c0_23, %c0_24], %44 {strides = array<i32>} : memref<32x9xf32, #tpu.memory_space<vmem>>, vector<32x9xf32>,
    return
  }
  func.func @transform_0(%arg0: i32) -> i32 {
    %c0_i32 = arith.constant 0 : i32
    %c0_i32_0 = arith.constant 0 : i32
    return %c0_i32 : i32
  }
  func.func @transform_1(%arg0: i32) -> (i32, i32) {
    %c0_i32 = arith.constant 0 : i32
    %c0_i32_0 = arith.constant 0 : i32
    return %arg0, %c0_i32 : i32, i32
  }
  func.func @transform_2(%arg0: i32) -> (i32, i32) {
    %c0_i32 = arith.constant 0 : i32
    %c0_i32_0 = arith.constant 0 : i32
    %c0_i32_1 = arith.constant 0 : i32
    return %c0_i32, %c0_i32_0 : i32, i32
  }
  func.func @transform_3(%arg0: i32) -> (i32, i32) {
    %c0_i32 = arith.constant 0 : i32
    %c0_i32_0 = arith.constant 0 : i32
    %c0_i32_1 = arith.constant 0 : i32
    return %c0_i32, %c0_i32_0 : i32, i32
  }
  func.func @transform_4(%arg0: i32) -> (i32, i32) {
    %c0_i32 = arith.constant 0 : i32
    %c0_i32_0 = arith.constant 0 : i32
    %c0_i32_1 = arith.constant 0 : i32
    return %c0_i32, %c0_i32_0 : i32, i32
  }
  func.func @transform_5(%arg0: i32) -> (i32, i32) {
    %c0_i32 = arith.constant 0 : i32
    %c0_i32_0 = arith.constant 0 : i32
    %c0_i32_1 = arith.constant 0 : i32
    return %c0_i32, %c0_i32_0 : i32, i32
  }
  func.func @transform_6(%arg0: i32) -> (i32, i32) {
    %c0_i32 = arith.constant 0 : i32
    %c0_i32_0 = arith.constant 0 : i32
    return %arg0, %c0_i32 : i32, i32
  }
  func.func @transform_7(%arg0: i32) -> (i32, i32) {
    %c0_i32 = arith.constant 0 : i32
    %c0_i32_0 = arith.constant 0 : i32
    return %arg0, %c0_i32 : i32, i32
  }
  func.func @transform_8(%arg0: i32) -> (i32, i32) {
    %c0_i32 = arith.constant 0 : i32
    %c0_i32_0 = arith.constant 0 : i32
    return %arg0, %c0_i32 : i32, i32
  }
  func.func @transform_9(%arg0: i32) -> (i32, i32) {
    %c0_i32 = arith.constant 0 : i32
    %c0_i32_0 = arith.constant 0 : i32
    return %arg0, %c0_i32 : i32, i32
  }
  func.func @transform_10(%arg0: i32) -> (i32, i32) {
    %c0_i32 = arith.constant 0 : i32
    %c0_i32_0 = arith.constant 0 : i32
    return %arg0, %c0_i32 : i32, i32
  }
}

</mosaic_0001>

<llo_original>
// kernel: snn_mfcc_forward.1
$region0: #{snn_mfcc_forward.1}
  #allocation0 [shape = 'u32[]', space=smem, size = 0x4, offset = 0x4, fixed_abs, tag = 'smem constant byte address 0x4 - core index']
  #allocation1 [shape = 'u32[144,128]{1,0:T(1,128)}', space=vmem, size = 0x12000, scoped, tag = 'internal scratch']
  %s0 = inlined_call_operand.vmem [shape: f32[4], index: 0, kind: input, shape index: {}]
  %s1 = inlined_call_operand.vmem [shape: f32[64,13], index: 1, kind: input, shape index: {}]
  %s2 = inlined_call_operand.vmem [shape: f32[13,128], index: 2, kind: input, shape index: {}]
  %s3 = inlined_call_operand.vmem [shape: f32[1,128], index: 3, kind: input, shape index: {}]
  %s4 = inlined_call_operand.vmem [shape: f32[128,9], index: 4, kind: input, shape index: {}]
  %s5 = inlined_call_operand.vmem [shape: f32[1,9], index: 5, kind: input, shape index: {}]
  %s6 = inlined_call_operand.vmem [shape: f32[64,128], index: 6, kind: input, shape index: {}]
  %s7 = inlined_call_operand.vmem [shape: f32[64,9], index: 7, kind: input, shape index: {}]
  %s8 = inlined_call_operand.vmem [shape: f32[64,9], index: 8, kind: output, shape index: {0}]
  %s9 = inlined_call_operand.hbm [shape: f32[64,128], index: 9, kind: output, shape index: {1}]
  %s10 = inlined_call_operand.vmem [shape: f32[64,9], index: 10, kind: output, shape index: {2}]
  %11 = xla_tuple %s8, %s9, %s10
  %s12 = sld [smem:[#allocation0]]
  $region85: #{snn_mfcc_forward.1} parent=0
    _
  %s14 = ssub.s32 1, %s12
  %s15 = scalar_select 0, %s14, %s12
  $region1: #{snn_mfcc_forward.1} parent=0
    #allocation2 [shape = 'u8[512]{0}', space=smem, size = 0x200, scoped, tag = 'input window, operand 0, single buffered']
    #allocation3 [shape = 's32[2]{0}', space=sflag, size = 0x8, scoped, tag = 'scoped memory for snn_mfcc_forward.1']
    #allocation4 [shape = 's32[2]{0}', space=sflag, size = 0x8, scoped, tag = 'scoped memory for snn_mfcc_forward.1']
    #allocation5 [shape = 'u8[32768]{0}', space=vmem, size = 0x8000, scoped, tag = 'output window, operand 1']
    %16 = vsyncpa [#allocation4], 0
    %17 = vsyncpa [#allocation3], 0
    %s18 = scalar_lea.sflag [#allocation3], 1
    %19 = vsyncpa %s18, 0
    loop: start=0, step=1, limit=4
    $region2: #{snn_mfcc_forward.1} parent=1 // loop_pre_header
      _
    $region3: #{snn_mfcc_forward.1} parent=1 // loop_header
      %s21 = sphi 0, %s25
      %p22 = scmp.ge.s32.totalorder %s21, 4
      %s29 = sphi 0, %s29
      %s31 = sphi 0, %s29
      %s32 = sphi 0, %s31
      %s46 = sphi 0, %s32
      %s52 = sphi 0, %s54
      %s55 = sphi 0, %s52
      %s56 = sphi 0, %s55
      %s72 = sphi 0, %s56
      %s76 = sphi 0, %s76
      %s78 = sphi 0, %s76
      %s79 = sphi 0, %s78
      %s93 = sphi 0, %s79
      %s97 = sphi 0, %s97
      %s99 = sphi 0, %s97
      %s100 = sphi 0, %s99
      %s114 = sphi 0, %s100
      %s118 = sphi 0, %s118
      %s120 = sphi 0, %s118
      %s121 = sphi 0, %s120
      %s135 = sphi 0, %s121
      %s139 = sphi 0, %s139
      %s141 = sphi 0, %s139
      %s142 = sphi 0, %s141
      %s156 = sphi 0, %s142
      %s162 = sphi 0, %s164
      %s165 = sphi 0, %s162
      %s166 = sphi 0, %s165
      %s182 = sphi 0, %s166
      %s188 = sphi 0, %s190
      %s191 = sphi 0, %s188
      %s192 = sphi 0, %s191
      %s208 = sphi 0, %s192
      %s214 = sphi 0, %s216
      %s217 = sphi 0, %s214
      %s218 = sphi 0, %s217
      %s234 = sphi 0, %s218
      %s240 = sphi 0, %s242
      %s243 = sphi 0, %s240
      %s244 = sphi 0, %s243
      %s260 = sphi 0, %s244
      %s266 = sphi 0, %s268
      %s269 = sphi 0, %s266
      %s270 = sphi 0, %s269
      %s286 = sphi 0, %s270
    $region4: #{snn_mfcc_forward.1} parent=1 // loop_header_branch
      %24 = sbr.rel (%p22) target = $region8
    $region5: #{snn_mfcc_forward.1} parent=1 // loop_body
      %s26 = ssub.s32 %s21, 1
      %s27 = ssub.s32 %s21, 2
      %s28 = sadd.s32 %s21, 1
      %s30 = sadd.s32 %s29, 1
      %p33 = scmp.eq.s32.totalorder %s21, 1
      %p34 = scmp.ne.s32.totalorder %s29, %s31
      %p35 = scmp.eq.s32.totalorder %s21, 0
      %p36 = por %p34, %p35
      %p37 = scmp.ne.s32.totalorder %s29, %s31
      %p38 = scmp.eq.s32.totalorder %s26, 1
      %p39 = por %p37, %p38
      %p40 = scmp.ne.s32.totalorder %s31, %s32
      %p41 = scmp.eq.s32.totalorder %s26, 0
      %p42 = por %p40, %p41
      %p43 = scmp.ne.s32.totalorder %s31, %s32
      %p44 = scmp.eq.s32.totalorder %s27, 1
      %p45 = por %p43, %p44
      %p47 = scmp.ne.s32.totalorder %s32, %s46
      %p48 = scmp.eq.s32.totalorder %s27, 0
      %p49 = por %p47, %p48
      %s50 = ssub.s32 %s21, %s28
      %p51 = scmp.eq.s32.totalorder %s50, 0
      %s53 = sadd.s32 %s52, 1
      %s54 = scalar_select %p51, %s52, %s53
      %p57 = pneg %p51
      %p58 = scmp.eq.s32.totalorder %s21, 1
      %p59 = por %p57, %p58
      %p60 = scmp.ne.s32.totalorder %s52, %s55
      %p61 = scmp.eq.s32.totalorder %s21, 0
      %p62 = por %p60, %p61
      %p63 = scmp.ne.s32.totalorder %s52, %s55
      %p64 = scmp.eq.s32.totalorder %s26, 1
      %p65 = por %p63, %p64
      %p66 = scmp.ne.s32.totalorder %s55, %s56
      %p67 = scmp.eq.s32.totalorder %s26, 0
      %p68 = por %p66, %p67
      %p69 = scmp.ne.s32.totalorder %s55, %s56
      %p70 = scmp.eq.s32.totalorder %s27, 1
      %p71 = por %p69, %p70
      %p73 = scmp.ne.s32.totalorder %s56, %s72
      %p74 = scmp.eq.s32.totalorder %s27, 0
      %p75 = por %p73, %p74
      %s77 = sadd.s32 %s76, 1
      %p80 = scmp.eq.s32.totalorder %s21, 1
      %p81 = scmp.ne.s32.totalorder %s76, %s78
      %p82 = scmp.eq.s32.totalorder %s21, 0
      %p83 = por %p81, %p82
      %p84 = scmp.ne.s32.totalorder %s76, %s78
      %p85 = scmp.eq.s32.totalorder %s26, 1
      %p86 = por %p84, %p85
      %p87 = scmp.ne.s32.totalorder %s78, %s79
      %p88 = scmp.eq.s32.totalorder %s26, 0
      %p89 = por %p87, %p88
      %p90 = scmp.ne.s32.totalorder %s78, %s79
      %p91 = scmp.eq.s32.totalorder %s27, 1
      %p92 = por %p90, %p91
      %p94 = scmp.ne.s32.totalorder %s79, %s93
      %p95 = scmp.eq.s32.totalorder %s27, 0
      %p96 = por %p94, %p95
      %s98 = sadd.s32 %s97, 1
      %p101 = scmp.eq.s32.totalorder %s21, 1
      %p102 = scmp.ne.s32.totalorder %s97, %s99
      %p103 = scmp.eq.s32.totalorder %s21, 0
      %p104 = por %p102, %p103
      %p105 = scmp.ne.s32.totalorder %s97, %s99
      %p106 = scmp.eq.s32.totalorder %s26, 1
      %p107 = por %p105, %p106
      %p108 = scmp.ne.s32.totalorder %s99, %s100
      %p109 = scmp.eq.s32.totalorder %s26, 0
      %p110 = por %p108, %p109
      %p111 = scmp.ne.s32.totalorder %s99, %s100
      %p112 = scmp.eq.s32.totalorder %s27, 1
      %p113 = por %p111, %p112
      %p115 = scmp.ne.s32.totalorder %s100, %s114
      %p116 = scmp.eq.s32.totalorder %s27, 0
      %p117 = por %p115, %p116
      %s119 = sadd.s32 %s118, 1
      %p122 = scmp.eq.s32.totalorder %s21, 1
      %p123 = scmp.ne.s32.totalorder %s118, %s120
      %p124 = scmp.eq.s32.totalorder %s21, 0
      %p125 = por %p123, %p124
      %p126 = scmp.ne.s32.totalorder %s118, %s120
      %p127 = scmp.eq.s32.totalorder %s26, 1
      %p128 = por %p126, %p127
      %p129 = scmp.ne.s32.totalorder %s120, %s121
      %p130 = scmp.eq.s32.totalorder %s26, 0
      %p131 = por %p129, %p130
      %p132 = scmp.ne.s32.totalorder %s120, %s121
      %p133 = scmp.eq.s32.totalorder %s27, 1
      %p134 = por %p132, %p133
      %p136 = scmp.ne.s32.totalorder %s121, %s135
      %p137 = scmp.eq.s32.totalorder %s27, 0
      %p138 = por %p136, %p137
      %s140 = sadd.s32 %s139, 1
      %p143 = scmp.eq.s32.totalorder %s21, 1
      %p144 = scmp.ne.s32.totalorder %s139, %s141
      %p145 = scmp.eq.s32.totalorder %s21, 0
      %p146 = por %p144, %p145
      %p147 = scmp.ne.s32.totalorder %s139, %s141
      %p148 = scmp.eq.s32.totalorder %s26, 1
      %p149 = por %p147, %p148
      %p150 = scmp.ne.s32.totalorder %s141, %s142
      %p151 = scmp.eq.s32.totalorder %s26, 0
      %p152 = por %p150, %p151
      %p153 = scmp.ne.s32.totalorder %s141, %s142
      %p154 = scmp.eq.s32.totalorder %s27, 1
      %p155 = por %p153, %p154
      %p157 = scmp.ne.s32.totalorder %s142, %s156
      %p158 = scmp.eq.s32.totalorder %s27, 0
      %p159 = por %p157, %p158
      %s160 = ssub.s32 %s21, %s28
      %p161 = scmp.eq.s32.totalorder %s160, 0
      %s163 = sadd.s32 %s162, 1
      %s164 = scalar_select %p161, %s162, %s163
      %p167 = pneg %p161
      %p168 = scmp.eq.s32.totalorder %s21, 1
      %p169 = por %p167, %p168
      %p170 = scmp.ne.s32.totalorder %s162, %s165
      %p171 = scmp.eq.s32.totalorder %s21, 0
      %p172 = por %p170, %p171
      %p173 = scmp.ne.s32.totalorder %s162, %s165
      %p174 = scmp.eq.s32.totalorder %s26, 1
      %p175 = por %p173, %p174
      %p176 = scmp.ne.s32.totalorder %s165, %s166
      %p177 = scmp.eq.s32.totalorder %s26, 0
      %p178 = por %p176, %p177
      %p179 = scmp.ne.s32.totalorder %s165, %s166
      %p180 = scmp.eq.s32.totalorder %s27, 1
      %p181 = por %p179, %p180
      %p183 = scmp.ne.s32.totalorder %s166, %s182
      %p184 = scmp.eq.s32.totalorder %s27, 0
      %p185 = por %p183, %p184
      %s186 = ssub.s32 %s21, %s28
      %p187 = scmp.eq.s32.totalorder %s186, 0
      %s189 = sadd.s32 %s188, 1
      %s190 = scalar_select %p187, %s188, %s189
      %p193 = pneg %p187
      %p194 = scmp.eq.s32.totalorder %s21, 1
      %p195 = por %p193, %p194
      %p196 = scmp.ne.s32.totalorder %s188, %s191
      %p197 = scmp.eq.s32.totalorder %s21, 0
      %p198 = por %p196, %p197
      %p199 = scmp.ne.s32.totalorder %s188, %s191
      %p200 = scmp.eq.s32.totalorder %s26, 1
      %p201 = por %p199, %p200
      %p202 = scmp.ne.s32.totalorder %s191, %s192
      %p203 = scmp.eq.s32.totalorder %s26, 0
      %p204 = por %p202, %p203
      %p205 = scmp.ne.s32.totalorder %s191, %s192
      %p206 = scmp.eq.s32.totalorder %s27, 1
      %p207 = por %p205, %p206
      %p209 = scmp.ne.s32.totalorder %s192, %s208
      %p210 = scmp.eq.s32.totalorder %s27, 0
      %p211 = por %p209, %p210
      %s212 = ssub.s32 %s21, %s28
      %p213 = scmp.eq.s32.totalorder %s212, 0
      %s215 = sadd.s32 %s214, 1
      %s216 = scalar_select %p213, %s214, %s215
      %p219 = pneg %p213
      %p220 = scmp.eq.s32.totalorder %s21, 1
      %p221 = por %p219, %p220
      %p222 = scmp.ne.s32.totalorder %s214, %s217
      %p223 = scmp.eq.s32.totalorder %s21, 0
      %p224 = por %p222, %p223
      %p225 = scmp.ne.s32.totalorder %s214, %s217
      %p226 = scmp.eq.s32.totalorder %s26, 1
      %p227 = por %p225, %p226
      %p228 = scmp.ne.s32.totalorder %s217, %s218
      %p229 = scmp.eq.s32.totalorder %s26, 0
      %p230 = por %p228, %p229
      %p231 = scmp.ne.s32.totalorder %s217, %s218
      %p232 = scmp.eq.s32.totalorder %s27, 1
      %p233 = por %p231, %p232
      %p235 = scmp.ne.s32.totalorder %s218, %s234
      %p236 = scmp.eq.s32.totalorder %s27, 0
      %p237 = por %p235, %p236
      %s238 = ssub.s32 %s21, %s28
      %p239 = scmp.eq.s32.totalorder %s238, 0
      %s241 = sadd.s32 %s240, 1
      %s242 = scalar_select %p239, %s240, %s241
      %p245 = pneg %p239
      %p246 = scmp.eq.s32.totalorder %s21, 1
      %p247 = por %p245, %p246
      %p248 = scmp.ne.s32.totalorder %s240, %s243
      %p249 = scmp.eq.s32.totalorder %s21, 0
      %p250 = por %p248, %p249
      %p251 = scmp.ne.s32.totalorder %s240, %s243
      %p252 = scmp.eq.s32.totalorder %s26, 1
      %p253 = por %p251, %p252
      %p254 = scmp.ne.s32.totalorder %s243, %s244
      %p255 = scmp.eq.s32.totalorder %s26, 0
      %p256 = por %p254, %p255
      %p257 = scmp.ne.s32.totalorder %s243, %s244
      %p258 = scmp.eq.s32.totalorder %s27, 1
      %p259 = por %p257, %p258
      %p261 = scmp.ne.s32.totalorder %s244, %s260
      %p262 = scmp.eq.s32.totalorder %s27, 0
      %p263 = por %p261, %p262
      %s264 = ssub.s32 %s21, %s28
      %p265 = scmp.eq.s32.totalorder %s264, 0
      %s267 = sadd.s32 %s266, 1
      %s268 = scalar_select %p265, %s266, %s267
      %p271 = pneg %p265
      %p272 = scmp.eq.s32.totalorder %s21, 1
      %p273 = por %p271, %p272
      %p274 = scmp.ne.s32.totalorder %s266, %s269
      %p275 = scmp.eq.s32.totalorder %s21, 0
      %p276 = por %p274, %p275
      %p277 = scmp.ne.s32.totalorder %s266, %s269
      %p278 = scmp.eq.s32.totalorder %s26, 1
      %p279 = por %p277, %p278
      %p280 = scmp.ne.s32.totalorder %s269, %s270
      %p281 = scmp.eq.s32.totalorder %s26, 0
      %p282 = por %p280, %p281
      %p283 = scmp.ne.s32.totalorder %s269, %s270
      %p284 = scmp.eq.s32.totalorder %s27, 1
      %p285 = por %p283, %p284
      %p287 = scmp.ne.s32.totalorder %s270, %s286
      %p288 = scmp.eq.s32.totalorder %s27, 0
      %p289 = por %p287, %p288
      %p290 = scmp.le.s32.totalorder 1, %s21
      %p291 = scmp.lt.s32.totalorder %s21, 3
      %p292 = pnand %p290, %p291
      %p293 = pneg %p292
      // Predicated region
      $region9: #{snn_mfcc_forward.1} parent=5 // pred_check
        _
      $region10: #{snn_mfcc_forward.1} parent=5 // pred_check_branch
        %295 = sbr.rel (%p292) target = $region12
      $region11: #{snn_mfcc_forward.1} parent=5 // pred_region
        %s296 = ssub.s32 %s21, 1
        // Predicated region
        $region13: #{snn_mfcc_forward.1} parent=11 // pred_check
          %p297 = pneg %p42
        $region14: #{snn_mfcc_forward.1} parent=11 // pred_check_branch
          %299 = sbr.rel (%p297) target = $region16
        $region15: #{snn_mfcc_forward.1} parent=11 // pred_region
          %s301 = ssub.s32 16, 16
          %302 = vsyncadd [#allocation4], %s301
          %s304 = sshll.u32 %s0, 4
          %s305 = int_to_ptr.vmem [resolvable:$true] %s304
          %307 = dma.vmem_to_smem %s305, 16, [#allocation2], [#allocation4]
        $region16: #{snn_mfcc_forward.1} parent=11 // pred_fallthru
          _
        // Predicated region
        $region17: #{snn_mfcc_forward.1} parent=11 // pred_check
          %p308 = pneg %p89
        $region18: #{snn_mfcc_forward.1} parent=11 // pred_check_branch
          %310 = sbr.rel (%p308) target = $region20
        $region19: #{snn_mfcc_forward.1} parent=11 // pred_region
          _
        $region20: #{snn_mfcc_forward.1} parent=11 // pred_fallthru
          _
        // Predicated region
        $region21: #{snn_mfcc_forward.1} parent=11 // pred_check
          %p311 = pneg %p110
        $region22: #{snn_mfcc_forward.1} parent=11 // pred_check_branch
          %313 = sbr.rel (%p311) target = $region24
        $region23: #{snn_mfcc_forward.1} parent=11 // pred_region
          _
        $region24: #{snn_mfcc_forward.1} parent=11 // pred_fallthru
          _
        // Predicated region
        $region25: #{snn_mfcc_forward.1} parent=11 // pred_check
          %p314 = pneg %p131
        $region26: #{snn_mfcc_forward.1} parent=11 // pred_check_branch
          %316 = sbr.rel (%p314) target = $region28
        $region27: #{snn_mfcc_forward.1} parent=11 // pred_region
          _
        $region28: #{snn_mfcc_forward.1} parent=11 // pred_fallthru
          _
        // Predicated region
        $region29: #{snn_mfcc_forward.1} parent=11 // pred_check
          %p317 = pneg %p152
        $region30: #{snn_mfcc_forward.1} parent=11 // pred_check_branch
          %319 = sbr.rel (%p317) target = $region32
        $region31: #{snn_mfcc_forward.1} parent=11 // pred_region
          _
        $region32: #{snn_mfcc_forward.1} parent=11 // pred_fallthru
          _
      $region12: #{snn_mfcc_forward.1} parent=5 // pred_fallthru
        _
      %p320 = scmp.lt.s32.totalorder %s21, 2
      // Predicated region
      $region33: #{snn_mfcc_forward.1} parent=5 // pred_check
        %p321 = pneg %p320
      $region34: #{snn_mfcc_forward.1} parent=5 // pred_check_branch
        %323 = sbr.rel (%p321) target = $region36
      $region35: #{snn_mfcc_forward.1} parent=5 // pred_region
        // Predicated region
        $region37: #{snn_mfcc_forward.1} parent=35 // pred_check
          %p324 = pneg %p62
        $region38: #{snn_mfcc_forward.1} parent=35 // pred_check_branch
          %326 = sbr.rel (%p324) target = $region40
        $region39: #{snn_mfcc_forward.1} parent=35 // pred_region
          %s327 = smul.u32 4, %s21
          %p328 = scmp.lt.s32.totalorder %s327, 7
          %s329 = scalar_select %p328, %s327, 7
          %s330 = smul.addr %s329, 8
          %s331 = scalar_lea.vmem %s1, %s330
          %s332 = smul.u32 4, %s21
        $region40: #{snn_mfcc_forward.1} parent=35 // pred_fallthru
          _
        // Predicated region
        $region41: #{snn_mfcc_forward.1} parent=35 // pred_check
          %p333 = pneg %p172
        $region42: #{snn_mfcc_forward.1} parent=35 // pred_check_branch
          %335 = sbr.rel (%p333) target = $region44
        $region43: #{snn_mfcc_forward.1} parent=35 // pred_region
          %s336 = smul.u32 4, %s21
          %p337 = scmp.lt.s32.totalorder %s336, 7
          %s338 = scalar_select %p337, %s336, 7
          %s339 = smul.addr %s338, 8
          %s340 = scalar_lea.vmem %s6, %s339
          %s341 = smul.u32 4, %s21
        $region44: #{snn_mfcc_forward.1} parent=35 // pred_fallthru
          _
        // Predicated region
        $region45: #{snn_mfcc_forward.1} parent=35 // pred_check
          %p342 = pneg %p198
        $region46: #{snn_mfcc_forward.1} parent=35 // pred_check_branch
          %344 = sbr.rel (%p342) target = $region48
        $region47: #{snn_mfcc_forward.1} parent=35 // pred_region
          %s345 = smul.u32 4, %s21
          %p346 = scmp.lt.s32.totalorder %s345, 7
          %s347 = scalar_select %p346, %s345, 7
          %s348 = smul.addr %s347, 8
          %s349 = scalar_lea.vmem %s7, %s348
          %s350 = smul.u32 4, %s21
        $region48: #{snn_mfcc_forward.1} parent=35 // pred_fallthru
          _
      $region36: #{snn_mfcc_forward.1} parent=5 // pred_fallthru
        _
      %p351 = scmp.le.s32.totalorder 1, %s21
      %p352 = scmp.lt.s32.totalorder %s21, 3
      %p353 = pnand %p351, %p352
      %p354 = pneg %p353
      // Predicated region
      $region49: #{snn_mfcc_forward.1} parent=5 // pred_check
        _
      $region50: #{snn_mfcc_forward.1} parent=5 // pred_check_branch
        %356 = sbr.rel (%p353) target = $region52
      $region51: #{snn_mfcc_forward.1} parent=5 // pred_region
        %s357 = ssub.s32 %s21, 1
        // Predicated region
        $region53: #{snn_mfcc_forward.1} parent=51 // pred_check
          %p358 = pneg %p42
        $region54: #{snn_mfcc_forward.1} parent=51 // pred_check_branch
          %360 = sbr.rel (%p358) target = $region56
        $region55: #{snn_mfcc_forward.1} parent=51 // pred_region
          %361 = dma.done [#allocation4], 16
        $region56: #{snn_mfcc_forward.1} parent=51 // pred_fallthru
          _
        %362 = sfence
        %p363 = pneg %p42
        %p364 = pneg %p39
        %s365 = smul.u32 4, %s26
        %p366 = scmp.lt.s32.totalorder %s365, 7
        %s367 = scalar_select %p366, %s365, 7
        %s368 = smul.addr %s367, 8
        %s369 = scalar_lea.vmem %s1, %s368
        %p370 = pneg %p68
        %p371 = pneg %p65
        %p372 = pneg %p89
        %p373 = pneg %p86
        %p374 = pneg %p110
        %p375 = pneg %p107
        %p376 = pneg %p131
        %p377 = pneg %p128
        %p378 = pneg %p152
        %p379 = pneg %p149
        %s380 = smul.u32 4, %s26
        %p381 = scmp.lt.s32.totalorder %s380, 7
        %s382 = scalar_select %p381, %s380, 7
        %s383 = smul.addr %s382, 8
        %s384 = scalar_lea.vmem %s6, %s383
        %p385 = pneg %p178
        %p386 = pneg %p175
        %s387 = smul.u32 4, %s26
        %p388 = scmp.lt.s32.totalorder %s387, 7
        %s389 = scalar_select %p388, %s387, 7
        %s390 = smul.addr %s389, 8
        %s391 = scalar_lea.vmem %s7, %s390
        %p392 = pneg %p204
        %p393 = pneg %p201
        %p394 = pneg %p230
        %p395 = pneg %p227
        %s396 = smul.u32 4, %s26
        %p397 = scmp.lt.s32.totalorder %s396, 7
        %s398 = scalar_select %p397, %s396, 7
        %s399 = smul.addr %s398, 8
        %s400 = scalar_lea.vmem %s8, %s399
        %p401 = pneg %p256
        %p402 = pneg %p253
        %s403 = sand.u32 %s243, 1
        %s404 = scalar_lea.sflag [#allocation3], %s403
        %s405 = sand.u32 %s243, 1
        %s406 = smul.addr %s405, 32
        %s407 = scalar_lea.vmem [#allocation5], %s406
        %p408 = pneg %p282
        %p409 = pneg %p279
        %s410 = smul.u32 4, %s26
        %p411 = scmp.lt.s32.totalorder %s410, 7
        %s412 = scalar_select %p411, %s410, 7
        %s413 = smul.addr %s412, 8
        %s414 = scalar_lea.vmem %s10, %s413
        %s415 = smul.u32 4, %s26
        %p416 = scmp.lt.s32.totalorder %s415, 7
        %s417 = scalar_select %p416, %s415, 7
        %s418 = smul.addr %s417, 8
        %s419 = scalar_lea.vmem %s1, %s418
        %s420 = smul.u32 4, %s26
        %s421 = smul.u32 4, %s26
        %p422 = scmp.lt.s32.totalorder %s421, 7
        %s423 = scalar_select %p422, %s421, 7
        %s424 = smul.addr %s423, 8
        %s425 = scalar_lea.vmem %s6, %s424
        %s426 = smul.u32 4, %s26
        %s427 = smul.u32 4, %s26
        %p428 = scmp.lt.s32.totalorder %s427, 7
        %s429 = scalar_select %p428, %s427, 7
        %s430 = smul.addr %s429, 8
        %s431 = scalar_lea.vmem %s7, %s430
        %s432 = smul.u32 4, %s26
        %s433 = smul.u32 4, %s26
        %p434 = scmp.lt.s32.totalorder %s433, 7
        %s435 = scalar_select %p434, %s433, 7
        %s436 = smul.addr %s435, 8
        %s437 = scalar_lea.vmem %s8, %s436
        %s438 = smul.u32 4, %s26
        %s439 = smul.u32 4, %s26
        %s440 = smul.u32 4, %s26
        %p441 = scmp.lt.s32.totalorder %s440, 7
        %s442 = scalar_select %p441, %s440, 7
        %s443 = smul.addr %s442, 8
        %s444 = scalar_lea.vmem %s10, %s443
        %s445 = smul.u32 4, %s26
        %s446 = sld [smem:[#allocation2]]
        %s447 = smax.f32 %s446, 0.0
        %s448 = smin.f32 %s447, 1.0
        %s449 = sld [smem:[#allocation2 + $0x1]]
        %s450 = sld [smem:[#allocation2 + $0x2]]
        %s451 = smax.f32 %s450, 0.0
        %s452 = smin.f32 %s451, 1.0
        %s453 = sld [smem:[#allocation2 + $0x3]]
        %v454 = vld [vmem:[%s419] sm:$0xff]
        %v455 = vld [vmem:[%s419 + $0x8] sm:$0xff]
        %v456 = vld [vmem:[%s419 + $0x10] sm:$0xff]
        %v457 = vld [vmem:[%s419 + $0x18] sm:$0xff]
        %v458 = vld [vmem:[%s2] sm:$0xff]
        %v459 = vld [vmem:[%s2 + $0x8] sm:$0x1f]
        %v460 = vld [vmem:[%s3] sm:$0x1]
        %v462 = vlaneseq
        %v463 = vshrl.u32 %v462, 7
        %v464 = vsub.s32 0, %v463
        %v465 = vrot.slane %v460, %v464
        %vm467 = vcmask 105472
        %v469 = vsel %vm467, %v454, 0
        %v472 = vsel %vm467, %v455, 0
        %v475 = vsel %vm467, %v456, 0
        %v478 = vsel %vm467, %v457, 0
        %vm480 = vcmask 1044480
        %v482 = vsel %vm480, %v459, 0
        %484 = vmatprep.subr.mxu0 0.0
        %485 = vmatpush1.msra.mxu0 0.0
        %486 = vmatprep.subr.mxu0 0.0
        %487 = vmatpush1.msra.mxu0 0.0
        %488 = vmatprep.subr.mxu0 0.0
        %489 = vmatpush1.msra.mxu0 0.0
        %490 = vmatprep.subr.mxu0 0.0
        %491 = vmatpush1.msra.mxu0 0.0
        %492 = vmatprep.subr.mxu0 0.0
        %493 = vmatpush1.msra.mxu0 0.0
        %494 = vmatprep.subr.mxu0 0.0
        %495 = vmatpush1.msra.mxu0 0.0
        %496 = vmatprep.subr.mxu0 0.0
        %497 = vmatpush1.msra.mxu0 0.0
        %498 = vmatprep.subr.mxu0 0.0
        %499 = vmatpush1.msra.mxu0 0.0
        %500 = vmatprep.subr.mxu0 0.0
        %501 = vmatpush1.msra.mxu0 0.0
        %502 = vmatprep.subr.mxu0 0.0
        %503 = vmatpush1.msra.mxu0 0.0
        %504 = vmatprep.subr.mxu0 0.0
        %505 = vmatpush1.msra.mxu0 0.0
        %506 = vmatprep.subr.mxu0 0.0
        %507 = vmatpush1.msra.mxu0 0.0
        %508 = vmatprep.subr.mxu0 0.0
        %509 = vmatpush1.msra.mxu0 0.0
        %510 = vmatprep.subr.mxu0 0.0
        %511 = vmatpush1.msra.mxu0 0.0
        %512 = vmatprep.subr.mxu0 0.0
        %513 = vmatpush1.msra.mxu0 %v482
        %514 = vmatprep.subr.mxu0 0.0
        %515 = vmatpush1.msra.mxu0 %v458
        %516 = vmatprep.subr.mxu0 0.0
        %517 = vmatpush2.msra.mxu0 0.0
        %518 = vmatprep.subr.mxu0 0.0
        %519 = vmatpush2.msra.mxu0 0.0
        %520 = vmatprep.subr.mxu0 0.0
        %521 = vmatpush2.msra.mxu0 0.0
        %522 = vmatprep.subr.mxu0 0.0
        %523 = vmatpush2.msra.mxu0 0.0
        %524 = vmatprep.subr.mxu0 0.0
        %525 = vmatpush2.msra.mxu0 0.0
        %526 = vmatprep.subr.mxu0 0.0
        %527 = vmatpush2.msra.mxu0 0.0
        %528 = vmatprep.subr.mxu0 0.0
        %529 = vmatpush2.msra.mxu0 0.0
        %530 = vmatprep.subr.mxu0 0.0
        %531 = vmatpush2.msra.mxu0 0.0
        %532 = vmatprep.subr.mxu0 0.0
        %533 = vmatpush2.msra.mxu0 0.0
        %534 = vmatprep.subr.mxu0 0.0
        %535 = vmatpush2.msra.mxu0 0.0
        %536 = vmatprep.subr.mxu0 0.0
        %537 = vmatpush2.msra.mxu0 0.0
        %538 = vmatprep.subr.mxu0 0.0
        %539 = vmatpush2.msra.mxu0 0.0
        %540 = vmatprep.subr.mxu0 0.0
        %541 = vmatpush2.msra.mxu0 0.0
        %542 = vmatprep.subr.mxu0 0.0
        %543 = vmatpush2.msra.mxu0 0.0
        %544 = vmatprep.subr.mxu0 0.0
        %545 = vmatpush2.msra.mxu0 0.0
        %546 = vmatprep.subr.mxu0 0.0
        %547 = vmatpush2.msra.mxu0 0.0
        %548 = vmatprep.mubr.f32.mxu0 0.0
        %549 = vmatmul.mubr.f32.gmra.mxu0 %v469
        %v550 = vpop.f32.mrf.mxu0
        %v551 = vadd.f32 %v465, %v550
        %v552 = vpop.f32.mrf.mxu0
        %553 = vmatprep.mubr.f32.mxu0 0.0
        %554 = vmatmul.mubr.f32.gmra.mxu0 %v472
        %v555 = vpop.f32.mrf.mxu0
        %v556 = vadd.f32 %v465, %v555
        %v557 = vpop.f32.mrf.mxu0
        %558 = vmatprep.mubr.f32.mxu0 0.0
        %559 = vmatmul.mubr.f32.gmra.mxu0 %v475
        %v560 = vpop.f32.mrf.mxu0
        %v561 = vadd.f32 %v465, %v560
        %v562 = vpop.f32.mrf.mxu0
        %563 = vmatprep.mubr.f32.mxu0 0.0
        %564 = vmatmul.mubr.f32.gmra.mxu0 %v478
        %v565 = vpop.f32.mrf.mxu0
        %v566 = vadd.f32 %v465, %v565
        %v567 = vpop.f32.mrf.mxu0
        %568 = vdwg.mxu0
        %v569 = vld [vmem:[%s425] sm:$0xff]
        %v570 = vld [vmem:[%s425 + $0x8] sm:$0xff]
        %v571 = vld [vmem:[%s425 + $0x10] sm:$0xff]
        %v572 = vld [vmem:[%s425 + $0x18] sm:$0xff]
        %v573 = vstv %s449
        %vm574 = vcmp.gt.f32.partialorder %v569, %v573
        %vm575 = vcmp.gt.f32.partialorder %v570, %v573
        %vm576 = vcmp.gt.f32.partialorder %v571, %v573
        %vm577 = vcmp.gt.f32.partialorder %v572, %v573
        %v578 = vsel %vm574, 1, 0
        %v579 = vsel %vm575, 1, 0
        %v580 = vsel %vm576, 1, 0
        %v581 = vsel %vm577, 1, 0
        %v582 = vcvt.s32.f32 %v578
        %v583 = vcvt.s32.f32 %v579
        %v584 = vcvt.s32.f32 %v580
        %v585 = vcvt.s32.f32 %v581
        %v586 = vstv %s448
        %v587 = vmul.f32 %v586, %v569
        %v588 = vmul.f32 %v586, %v570
        %v589 = vmul.f32 %v586, %v571
        %v590 = vmul.f32 %v586, %v572
        %v591 = vadd.f32 %v587, %v551
        %v592 = vadd.f32 %v588, %v556
        %v593 = vadd.f32 %v589, %v561
        %v594 = vadd.f32 %v590, %v566
        %v595 = vmul.f32 %v582, %v573
        %v596 = vmul.f32 %v583, %v573
        %v597 = vmul.f32 %v584, %v573
        %v598 = vmul.f32 %v585, %v573
        %v599 = vsub.f32 %v591, %v595
        %v600 = vsub.f32 %v592, %v596
        %v601 = vsub.f32 %v593, %v597
        %v602 = vsub.f32 %v594, %v598
        %vm603 = vcmp.gt.f32.partialorder %v599, %v573
        %vm604 = vcmp.gt.f32.partialorder %v600, %v573
        %vm605 = vcmp.gt.f32.partialorder %v601, %v573
        %vm606 = vcmp.gt.f32.partialorder %v602, %v573
        %v607 = vsel %vm603, 1, 0
        %v608 = vsel %vm604, 1, 0
        %v609 = vsel %vm605, 1, 0
        %v610 = vsel %vm606, 1, 0
        %v611 = vcvt.s32.f32 %v607
        %v612 = vcvt.s32.f32 %v608
        %v613 = vcvt.s32.f32 %v609
        %v614 = vcvt.s32.f32 %v610
        %v615 = vld [vmem:[%s4] sm:$0xff]
        %v616 = vld [vmem:[%s4 + $0x8] sm:$0xff]
        %v617 = vld [vmem:[%s4 + $0x10] sm:$0xff]
        %v618 = vld [vmem:[%s4 + $0x18] sm:$0xff]
        %v619 = vld [vmem:[%s4 + $0x20] sm:$0xff]
        %v620 = vld [vmem:[%s4 + $0x28] sm:$0xff]
        %v621 = vld [vmem:[%s4 + $0x30] sm:$0xff]
        %v622 = vld [vmem:[%s4 + $0x38] sm:$0xff]
        %v623 = vld [vmem:[%s4 + $0x40] sm:$0xff]
        %v624 = vld [vmem:[%s4 + $0x48] sm:$0xff]
        %v625 = vld [vmem:[%s4 + $0x50] sm:$0xff]
        %v626 = vld [vmem:[%s4 + $0x58] sm:$0xff]
        %v627 = vld [vmem:[%s4 + $0x60] sm:$0xff]
        %v628 = vld [vmem:[%s4 + $0x68] sm:$0xff]
        %v629 = vld [vmem:[%s4 + $0x70] sm:$0xff]
        %v630 = vld [vmem:[%s4 + $0x78] sm:$0xff]
        %v631 = vld [vmem:[%s5] sm:$0x1]
        %v633 = vlaneseq
        %v634 = vshrl.u32 %v633, 7
        %v635 = vsub.s32 0, %v634
        %v636 = vrot.slane %v631, %v635
        %638 = vmatprep.subr.mxu0 0.0
        %639 = vmatpush1.msra.mxu0 %v630
        %640 = vmatprep.subr.mxu0 0.0
        %641 = vmatpush1.msra.mxu0 %v629
        %642 = vmatprep.subr.mxu0 0.0
        %643 = vmatpush1.msra.mxu0 %v628
        %644 = vmatprep.subr.mxu0 0.0
        %645 = vmatpush1.msra.mxu0 %v627
        %646 = vmatprep.subr.mxu0 0.0
        %647 = vmatpush1.msra.mxu0 %v626
        %648 = vmatprep.subr.mxu0 0.0
        %649 = vmatpush1.msra.mxu0 %v625
        %650 = vmatprep.subr.mxu0 0.0
        %651 = vmatpush1.msra.mxu0 %v624
        %652 = vmatprep.subr.mxu0 0.0
        %653 = vmatpush1.msra.mxu0 %v623
        %654 = vmatprep.subr.mxu0 0.0
        %655 = vmatpush1.msra.mxu0 %v622
        %656 = vmatprep.subr.mxu0 0.0
        %657 = vmatpush1.msra.mxu0 %v621
        %658 = vmatprep.subr.mxu0 0.0
        %659 = vmatpush1.msra.mxu0 %v620
        %660 = vmatprep.subr.mxu0 0.0
        %661 = vmatpush1.msra.mxu0 %v619
        %662 = vmatprep.subr.mxu0 0.0
        %663 = vmatpush1.msra.mxu0 %v618
        %664 = vmatprep.subr.mxu0 0.0
        %665 = vmatpush1.msra.mxu0 %v617
        %666 = vmatprep.subr.mxu0 0.0
        %667 = vmatpush1.msra.mxu0 %v616
        %668 = vmatprep.subr.mxu0 0.0
        %669 = vmatpush1.msra.mxu0 %v615
        %670 = vmatprep.subr.mxu0 0.0
        %671 = vmatpush2.msra.mxu0 0.0
        %672 = vmatprep.subr.mxu0 0.0
        %673 = vmatpush2.msra.mxu0 0.0
        %674 = vmatprep.subr.mxu0 0.0
        %675 = vmatpush2.msra.mxu0 0.0
        %676 = vmatprep.subr.mxu0 0.0
        %677 = vmatpush2.msra.mxu0 0.0
        %678 = vmatprep.subr.mxu0 0.0
        %679 = vmatpush2.msra.mxu0 0.0
        %680 = vmatprep.subr.mxu0 0.0
        %681 = vmatpush2.msra.mxu0 0.0
        %682 = vmatprep.subr.mxu0 0.0
        %683 = vmatpush2.msra.mxu0 0.0
        %684 = vmatprep.subr.mxu0 0.0
        %685 = vmatpush2.msra.mxu0 0.0
        %686 = vmatprep.subr.mxu0 0.0
        %687 = vmatpush2.msra.mxu0 0.0
        %688 = vmatprep.subr.mxu0 0.0
        %689 = vmatpush2.msra.mxu0 0.0
        %690 = vmatprep.subr.mxu0 0.0
        %691 = vmatpush2.msra.mxu0 0.0
        %692 = vmatprep.subr.mxu0 0.0
        %693 = vmatpush2.msra.mxu0 0.0
        %694 = vmatprep.subr.mxu0 0.0
        %695 = vmatpush2.msra.mxu0 0.0
        %696 = vmatprep.subr.mxu0 0.0
        %697 = vmatpush2.msra.mxu0 0.0
        %698 = vmatprep.subr.mxu0 0.0
        %699 = vmatpush2.msra.mxu0 0.0
        %700 = vmatprep.subr.mxu0 0.0
        %701 = vmatpush2.msra.mxu0 0.0
        %702 = vmatprep.mubr.f32.mxu0 0.0
        %703 = vmatmul.mubr.f32.gmra.mxu0 %v611
        %v704 = vpop.f32.mrf.mxu0
        %v705 = vadd.f32 %v636, %v704
        %v706 = vpop.f32.mrf.mxu0
        %707 = vmatprep.mubr.f32.mxu0 0.0
        %708 = vmatmul.mubr.f32.gmra.mxu0 %v612
        %v709 = vpop.f32.mrf.mxu0
        %v710 = vadd.f32 %v636, %v709
        %v711 = vpop.f32.mrf.mxu0
        %712 = vmatprep.mubr.f32.mxu0 0.0
        %713 = vmatmul.mubr.f32.gmra.mxu0 %v613
        %v714 = vpop.f32.mrf.mxu0
        %v715 = vadd.f32 %v636, %v714
        %v716 = vpop.f32.mrf.mxu0
        %717 = vmatprep.mubr.f32.mxu0 0.0
        %718 = vmatmul.mubr.f32.gmra.mxu0 %v614
        %v719 = vpop.f32.mrf.mxu0
        %v720 = vadd.f32 %v636, %v719
        %v721 = vpop.f32.mrf.mxu0
        %722 = vdwg.mxu0
        %v723 = vld [vmem:[%s431] sm:$0xff]
        %v724 = vld [vmem:[%s431 + $0x8] sm:$0xff]
        %v725 = vld [vmem:[%s431 + $0x10] sm:$0xff]
        %v726 = vld [vmem:[%s431 + $0x18] sm:$0xff]
        %v727 = vstv %s453
        %vm728 = vcmp.gt.f32.partialorder %v723, %v727
        %vm729 = vcmp.gt.f32.partialorder %v724, %v727
        %vm730 = vcmp.gt.f32.partialorder %v725, %v727
        %vm731 = vcmp.gt.f32.partialorder %v726, %v727
        %v732 = vsel %vm728, 1, 0
        %v733 = vsel %vm729, 1, 0
        %v734 = vsel %vm730, 1, 0
        %v735 = vsel %vm731, 1, 0
        %v736 = vcvt.s32.f32 %v732
        %v737 = vcvt.s32.f32 %v733
        %v738 = vcvt.s32.f32 %v734
        %v739 = vcvt.s32.f32 %v735
        %v740 = vstv %s452
        %v741 = vmul.f32 %v740, %v723
        %v742 = vmul.f32 %v740, %v724
        %v743 = vmul.f32 %v740, %v725
        %v744 = vmul.f32 %v740, %v726
        %v745 = vadd.f32 %v741, %v705
        %v746 = vadd.f32 %v742, %v710
        %v747 = vadd.f32 %v743, %v715
        %v748 = vadd.f32 %v744, %v720
        %v749 = vmul.f32 %v736, %v727
        %v750 = vmul.f32 %v737, %v727
        %v751 = vmul.f32 %v738, %v727
        %v752 = vmul.f32 %v739, %v727
        %v753 = vsub.f32 %v745, %v749
        %v754 = vsub.f32 %v746, %v750
        %v755 = vsub.f32 %v747, %v751
        %v756 = vsub.f32 %v748, %v752
        %vm757 = vcmp.gt.f32.partialorder %v753, %v727
        %vm758 = vcmp.gt.f32.partialorder %v754, %v727
        %vm759 = vcmp.gt.f32.partialorder %v755, %v727
        %vm760 = vcmp.gt.f32.partialorder %v756, %v727
        %v761 = vsel %vm757, 1, 0
        %v762 = vsel %vm758, 1, 0
        %v763 = vsel %vm759, 1, 0
        %v764 = vsel %vm760, 1, 0
        %v765 = vcvt.s32.f32 %v761
        %v766 = vcvt.s32.f32 %v762
        %v767 = vcvt.s32.f32 %v763
        %v768 = vcvt.s32.f32 %v764
        %vm769 = vcmask 72704
        %770 = vst.msk [vmem:[%s437] sm:$0xff] %vm769, %v765
        %771 = vst.msk [vmem:[%s437 + $0x8] sm:$0xff] %vm769, %v766
        %772 = vst.msk [vmem:[%s437 + $0x10] sm:$0xff] %vm769, %v767
        %773 = vst.msk [vmem:[%s437 + $0x18] sm:$0xff] %vm769, %v768
        %774 = vst [vmem:[%s407] sm:$0xff] %v599
        %775 = vst [vmem:[%s407 + $0x8] sm:$0xff] %v600
        %776 = vst [vmem:[%s407 + $0x10] sm:$0xff] %v601
        %777 = vst [vmem:[%s407 + $0x18] sm:$0xff] %v602
        %778 = vst.msk [vmem:[%s444] sm:$0xff] %vm769, %v753
        %779 = vst.msk [vmem:[%s444 + $0x8] sm:$0xff] %vm769, %v754
        %780 = vst.msk [vmem:[%s444 + $0x10] sm:$0xff] %vm769, %v755
        %781 = vst.msk [vmem:[%s444 + $0x18] sm:$0xff] %vm769, %v756
        %s782 = smul.u32 4, %s26
        %p783 = scmp.lt.s32.totalorder %s782, 7
        %s784 = scalar_select %p783, %s782, 7
        %s785 = smul.addr %s784, 8
        %s786 = scalar_lea.vmem %s8, %s785
        %s787 = sand.u32 %s243, 1
        %s788 = scalar_lea.sflag [#allocation3], %s787
        %s789 = sand.u32 %s243, 1
        %s790 = smul.addr %s789, 32
        %s791 = scalar_lea.vmem [#allocation5], %s790
        %s792 = smul.u32 4, %s26
        %p793 = scmp.lt.s32.totalorder %s792, 7
        %s794 = scalar_select %p793, %s792, 7
        %s795 = smul.addr %s794, 8
        %s796 = scalar_lea.vmem %s10, %s795
        // Predicated region
        $region57: #{snn_mfcc_forward.1} parent=51 // pred_check
          %p797 = pneg %p227
        $region58: #{snn_mfcc_forward.1} parent=51 // pred_check_branch
          %799 = sbr.rel (%p797) target = $region60
        $region59: #{snn_mfcc_forward.1} parent=51 // pred_region
          %s800 = smul.u32 4, %s26
        $region60: #{snn_mfcc_forward.1} parent=51 // pred_fallthru
          _
        // Predicated region
        $region61: #{snn_mfcc_forward.1} parent=51 // pred_check
          %p801 = pneg %p253
        $region62: #{snn_mfcc_forward.1} parent=51 // pred_check_branch
          %803 = sbr.rel (%p801) target = $region64
        $region63: #{snn_mfcc_forward.1} parent=51 // pred_region
          %s804 = smul.u32 4, %s26
          %s806 = ssub.s32 512, 512
          %807 = vsyncadd %s788, %s806
          %s808 = smul.addr %s804, 128
          %s809 = scalar_lea.hbm %s9, %s808
          %s810 = sshll.u32 %s791, 4
          %s811 = int_to_ptr.vmem [resolvable:$true] %s810
          %816 = dma.vmem_to_hbm [thread:$0]  %s811, 512, %s809, %s788, 128, 128, 8
        $region64: #{snn_mfcc_forward.1} parent=51 // pred_fallthru
          _
        // Predicated region
        $region65: #{snn_mfcc_forward.1} parent=51 // pred_check
          %p817 = pneg %p279
        $region66: #{snn_mfcc_forward.1} parent=51 // pred_check_branch
          %819 = sbr.rel (%p817) target = $region68
        $region67: #{snn_mfcc_forward.1} parent=51 // pred_region
          %s820 = smul.u32 4, %s26
        $region68: #{snn_mfcc_forward.1} parent=51 // pred_fallthru
          _
      $region52: #{snn_mfcc_forward.1} parent=5 // pred_fallthru
        _
      %p821 = scmp.le.s32.totalorder 2, %s21
      // Predicated region
      $region69: #{snn_mfcc_forward.1} parent=5 // pred_check
        %p822 = pneg %p821
      $region70: #{snn_mfcc_forward.1} parent=5 // pred_check_branch
        %824 = sbr.rel (%p822) target = $region72
      $region71: #{snn_mfcc_forward.1} parent=5 // pred_region
        %s825 = ssub.s32 %s21, 2
        // Predicated region
        $region73: #{snn_mfcc_forward.1} parent=71 // pred_check
          %p826 = pneg %p233
        $region74: #{snn_mfcc_forward.1} parent=71 // pred_check_branch
          %828 = sbr.rel (%p826) target = $region76
        $region75: #{snn_mfcc_forward.1} parent=71 // pred_region
          %s829 = smul.u32 4, %s27
          %p830 = scmp.lt.s32.totalorder %s829, 7
          %s831 = scalar_select %p830, %s829, 7
          %s832 = smul.addr %s831, 8
          %s833 = scalar_lea.vmem %s8, %s832
        $region76: #{snn_mfcc_forward.1} parent=71 // pred_fallthru
          _
        // Predicated region
        $region77: #{snn_mfcc_forward.1} parent=71 // pred_check
          %p834 = pneg %p259
        $region78: #{snn_mfcc_forward.1} parent=71 // pred_check_branch
          %836 = sbr.rel (%p834) target = $region80
        $region79: #{snn_mfcc_forward.1} parent=71 // pred_region
          %s837 = sand.u32 %s244, 1
          %s838 = scalar_lea.sflag [#allocation3], %s837
          %s839 = sand.u32 %s244, 1
          %s840 = smul.addr %s839, 32
          %s841 = scalar_lea.vmem [#allocation5], %s840
          %842 = dma.done %s838, 512
        $region80: #{snn_mfcc_forward.1} parent=71 // pred_fallthru
          _
        // Predicated region
        $region81: #{snn_mfcc_forward.1} parent=71 // pred_check
          %p843 = pneg %p285
        $region82: #{snn_mfcc_forward.1} parent=71 // pred_check_branch
          %845 = sbr.rel (%p843) target = $region84
        $region83: #{snn_mfcc_forward.1} parent=71 // pred_region
          %s846 = smul.u32 4, %s27
          %p847 = scmp.lt.s32.totalorder %s846, 7
          %s848 = scalar_select %p847, %s846, 7
          %s849 = smul.addr %s848, 8
          %s850 = scalar_lea.vmem %s10, %s849
        $region84: #{snn_mfcc_forward.1} parent=71 // pred_fallthru
          _
      $region72: #{snn_mfcc_forward.1} parent=5 // pred_fallthru
        _
    $region6: #{snn_mfcc_forward.1} parent=1 // loop_footer
      %s25 = sadd.s32 1, %s21
    $region7: #{snn_mfcc_forward.1} parent=1 // loop_footer_branch
      %20 = sbr.rel target = $region3
    $region8: #{snn_mfcc_forward.1} parent=1 // loop_exit
      _
    %851 = vsyncpa [#allocation3], 1
    %s852 = scalar_lea.sflag [#allocation3], 1
    %853 = vsyncpa %s852, 1
    %854 = vsyncpa [#allocation4], 1
    %s855 = scalar_lea.sflag [#allocation4], 1
    %856 = vsyncpa %s855, 1

</llo_original>
